<compile_context>
chip_gen: v5e
topology: v5e:2x2
jax: 0.10.0
libtpu: 0.0.40
codegen_flags: <defaults>
</compile_context>

<pallas_src>
import functools
import math

import jax
import jax.numpy as jnp
import numpy as np
from jax.experimental import pallas as pl
from jax.experimental.pallas import tpu as pltpu

F32 = jnp.float32
BF16 = jnp.bfloat16
HIGH = jax.lax.Precision.HIGHEST  # reference only
_VMEM_LIMIT = 64 * 1024 * 1024


# ---------------------------------------------------------------------------
# In-kernel helpers
# ---------------------------------------------------------------------------

def _ln_rows(x, g, b, eps):
    # "Annotated Transformer" LayerNorm: unbiased std, eps added to std.
    mean = jnp.mean(x, axis=-1, keepdims=True)
    d = x - mean
    var = jnp.sum(d * d, axis=-1, keepdims=True) * (1.0 / (x.shape[-1] - 1))
    return g * d / (jnp.sqrt(var) + eps) + b


def _mha_proj(q, k, v, bias, wo_ref, H, Dh, scale):
    """Multi-head attention + output projection.

    q: (Tq, H*Dh) f32, k/v: (Tk, H*Dh) f32, bias: (1, Tk) additive mask,
    wo_ref: (H*Dh, D) f32 ref.  Returns (Tq, D) f32 = concat_h(ctx_h) @ wo,
    computed as sum_h ctx_h @ wo[h*Dh:(h+1)*Dh, :] (no concat / transpose).
    """
    Tq = q.shape[0]
    Dm = wo_ref.shape[1]
    qb = q.astype(BF16)
    kb = k.astype(BF16)
    vb = v.astype(BF16)
    acc = jnp.zeros((Tq, Dm), F32)
    for h in range(H):
        lo, hi = h * Dh, (h + 1) * Dh
        # scores: contract last dims (q @ k^T) without materializing k.T
        s = jax.lax.dot_general(
            qb[:, lo:hi], kb[:, lo:hi],
            dimension_numbers=(((1,), (1,)), ((), ())),
            preferred_element_type=F32) * scale                 # (Tq, Tk)
        s = s + bias                                            # additive mask
        m = jnp.max(s, axis=-1, keepdims=True)
        p = jnp.exp(s - m)
        denom = jnp.sum(p, axis=-1, keepdims=True)
        p = p * pl.reciprocal(denom, approx=True)
        ctx_h = jnp.dot(p.astype(BF16), vb[:, lo:hi],
                        preferred_element_type=F32)             # (Tq, Dh)
        acc = acc + jnp.dot(ctx_h.astype(BF16),
                            wo_ref[lo:hi, :].astype(BF16),
                            preferred_element_type=F32)         # (Tq, D)
    return acc


# ---------------------------------------------------------------------------
# Fused sublayer kernels
# ---------------------------------------------------------------------------

def _self_attn_kernel(x_ref, bias_ref, g_ref, b_ref, wqkv_ref, bqkv_ref,
                      wo_ref, bo_ref, o_ref, *, H, Dh, scale, eps):
    # One batch element: x + OutProj(MHA(LN(x), LN(x), LN(x)))
    x = x_ref[0]                                                # (T, D) f32
    D = x.shape[-1]
    xn = _ln_rows(x, g_ref[...], b_ref[...], eps)
    qkv = jnp.dot(xn.astype(BF16), wqkv_ref[...],
                  preferred_element_type=F32) + bqkv_ref[...]   # (T, 3D)
    q = qkv[:, :D]
    k = qkv[:, D:2 * D]
    v = qkv[:, 2 * D:]
    attn = _mha_proj(q, k, v, bias_ref[0], wo_ref, H, Dh, scale)
    o_ref[0] = x + attn + bo_ref[...]


def _cross_attn_kernel(x_ref, enc_ref, bias_ref, g_ref, b_ref,
                       wq_ref, bq_ref, wkv_ref, bkv_ref, wo_ref, bo_ref,
                       o_ref, *, H, Dh, scale, eps):
    # One batch element: x + OutProj(MHA(LN(x), enc, enc))  (enc not LN'd)
    x = x_ref[0]                                                # (Tq, D)
    enc = enc_ref[0]                                            # (Tk, D)
    D = x.shape[-1]
    xn = _ln_rows(x, g_ref[...], b_ref[...], eps)
    q = jnp.dot(xn.astype(BF16), wq_ref[...],
                preferred_element_type=F32) + bq_ref[...]       # (Tq, D)
    kv = jnp.dot(enc.astype(BF16), wkv_ref[...],
                 preferred_element_type=F32) + bkv_ref[...]     # (Tk, 2D)
    k = kv[:, :D]
    v = kv[:, D:]
    attn = _mha_proj(q, k, v, bias_ref[0], wo_ref, H, Dh, scale)
    o_ref[0] = x + attn + bo_ref[...]


def _ffn_kernel(x_ref, g_ref, b_ref, w1_ref, b1_ref, w2_ref, b2_ref, o_ref,
                *, eps):
    # Row tile: x + W2(relu(W1 @ LN(x) + b1)) + b2
    x = x_ref[...]                                              # (tn, D) f32
    xn = _ln_rows(x, g_ref[...], b_ref[...], eps)
    h = jnp.dot(xn.astype(BF16), w1_ref[...],
                preferred_element_type=F32) + b1_ref[...]
    h = jnp.maximum(h, 0.0)
    y = jnp.dot(h.astype(BF16), w2_ref[...],
                preferred_element_type=F32) + b2_ref[...]
    o_ref[...] = x + y


# ---------------------------------------------------------------------------
# Wrappers (one pallas_call per sublayer)
# ---------------------------------------------------------------------------

def self_attn_sublayer(x, mask, p, ln_p, num_heads):
    B, T, D = x.shape
    H = num_heads
    Dh = D // H
    bias = (1.0 - mask) * -1e9                                  # (B, 1, T)
    kernel = functools.partial(_self_attn_kernel, H=H, Dh=Dh,
                               scale=1.0 / math.sqrt(Dh), eps=1e-6)
    return pl.pallas_call(
        kernel,
        out_shape=jax.ShapeDtypeStruct((B, T, D), F32),
        grid=(B,),
        in_specs=[
            pl.BlockSpec((1, T, D), lambda b: (b, 0, 0)),       # x (residual)
            pl.BlockSpec((1, 1, T), lambda b: (b, 0, 0)),       # mask bias
            pl.BlockSpec((1, D), lambda b: (0, 0)),             # ln gamma
            pl.BlockSpec((1, D), lambda b: (0, 0)),             # ln beta
            pl.BlockSpec((D, 3 * D), lambda b: (0, 0)),         # wqkv (bf16)
            pl.BlockSpec((1, 3 * D), lambda b: (0, 0)),         # bqkv
            pl.BlockSpec((D, D), lambda b: (0, 0)),             # wo (f32)
            pl.BlockSpec((1, D), lambda b: (0, 0)),             # bo
        ],
        out_specs=pl.BlockSpec((1, T, D), lambda b: (b, 0, 0)),
        compiler_params=pltpu.CompilerParams(
            dimension_semantics=("parallel",),
            vmem_limit_bytes=_VMEM_LIMIT),
    )(x, bias, ln_p["g"], ln_p["b"], p["wqkv"], p["bqkv"], p["wo"], p["bo"])


def cross_attn_sublayer(x, enc, mask, p, ln_p, num_heads):
    B, Tq, D = x.shape
    Tk = enc.shape[1]
    H = num_heads
    Dh = D // H
    bias = (1.0 - mask) * -1e9                                  # (B, 1, Tk)
    kernel = functools.partial(_cross_attn_kernel, H=H, Dh=Dh,
                               scale=1.0 / math.sqrt(Dh), eps=1e-6)
    return pl.pallas_call(
        kernel,
        out_shape=jax.ShapeDtypeStruct((B, Tq, D), F32),
        grid=(B,),
        in_specs=[
            pl.BlockSpec((1, Tq, D), lambda b: (b, 0, 0)),      # x (residual)
            pl.BlockSpec((1, Tk, D), lambda b: (b, 0, 0)),      # enc
            pl.BlockSpec((1, 1, Tk), lambda b: (b, 0, 0)),      # mask bias
            pl.BlockSpec((1, D), lambda b: (0, 0)),             # ln gamma
            pl.BlockSpec((1, D), lambda b: (0, 0)),             # ln beta
            pl.BlockSpec((D, D), lambda b: (0, 0)),             # wq (bf16)
            pl.BlockSpec((1, D), lambda b: (0, 0)),             # bq
            pl.BlockSpec((D, 2 * D), lambda b: (0, 0)),         # wkv (bf16)
            pl.BlockSpec((1, 2 * D), lambda b: (0, 0)),         # bkv
            pl.BlockSpec((D, D), lambda b: (0, 0)),             # wo (f32)
            pl.BlockSpec((1, D), lambda b: (0, 0)),             # bo
        ],
        out_specs=pl.BlockSpec((1, Tq, D), lambda b: (b, 0, 0)),
        compiler_params=pltpu.CompilerParams(
            dimension_semantics=("parallel",),
            vmem_limit_bytes=_VMEM_LIMIT),
    )(x, enc, bias, ln_p["g"], ln_p["b"],
      p["wq"], p["bq"], p["wkv"], p["bkv"], p["wo"], p["bo"])


def ffn_sublayer(x, p, ln_p, *, row_tile=256):
    B, T, D = x.shape
    N = B * T
    Dff = p["w1"].shape[1]
    tn = N if N <= row_tile else row_tile
    x2 = x.reshape(N, D)
    out = pl.pallas_call(
        functools.partial(_ffn_kernel, eps=1e-6),
        out_shape=jax.ShapeDtypeStruct((N, D), F32),
        grid=(pl.cdiv(N, tn),),
        in_specs=[
            pl.BlockSpec((tn, D), lambda i: (i, 0)),            # x (residual)
            pl.BlockSpec((1, D), lambda i: (0, 0)),             # ln gamma
            pl.BlockSpec((1, D), lambda i: (0, 0)),             # ln beta
            pl.BlockSpec((D, Dff), lambda i: (0, 0)),           # w1 (bf16)
            pl.BlockSpec((1, Dff), lambda i: (0, 0)),           # b1
            pl.BlockSpec((Dff, D), lambda i: (0, 0)),           # w2 (bf16)
            pl.BlockSpec((1, D), lambda i: (0, 0)),             # b2
        ],
        out_specs=pl.BlockSpec((tn, D), lambda i: (i, 0)),
        compiler_params=pltpu.CompilerParams(
            dimension_semantics=("parallel",),
            vmem_limit_bytes=_VMEM_LIMIT),
    )(x2, ln_p["g"], ln_p["b"], p["w1"], p["b1"], p["w2"], p["b2"])
    return out.reshape(B, T, D)


def cap_encoder_layer(in_ft, ft, b_masks, kparams, num_heads):
    """forward(in_ft, ft, b): returns in_ft with in_ft['cap'] updated."""
    c = in_ft["cap"]                                            # (B, Tq, D)

    # sublayer[0]: self-attention, masked by b.query_mask
    c = self_attn_sublayer(c, b_masks["query_mask"],
                           kparams["attn_self"], kparams["ln"][0], num_heads)
    # sublayer[1]: cross-attention onto ft['encoded_cap'], masked by b.cap_mask
    c = cross_attn_sublayer(c, ft["encoded_cap"], b_masks["cap_mask"],
                            kparams["attn_cross"], kparams["ln"][1], num_heads)
    # sublayer[2]: position-wise feed-forward
    c = ffn_sublayer(c, kparams["ff"], kparams["ln"][2])

    out = dict(in_ft)
    out["cap"] = c
    return out


# ---------------------------------------------------------------------------
# Parameter preparation (concat + bf16 cast at the kernel boundary)
# ---------------------------------------------------------------------------

def prepare_params(params):
    def self_attn(p):
        return dict(
            wqkv=jnp.concatenate([p["wq"], p["wk"], p["wv"]],
                                 axis=1).astype(BF16),
            bqkv=jnp.concatenate([p["bq"], p["bk"], p["bv"]]).reshape(1, -1),
            wo=p["wo"].astype(F32),
            bo=p["bo"].reshape(1, -1))

    def cross_attn(p):
        return dict(
            wq=p["wq"].astype(BF16), bq=p["bq"].reshape(1, -1),
            wkv=jnp.concatenate([p["wk"], p["wv"]], axis=1).astype(BF16),
            bkv=jnp.concatenate([p["bk"], p["bv"]]).reshape(1, -1),
            wo=p["wo"].astype(F32),
            bo=p["bo"].reshape(1, -1))

    ff = dict(w1=params["ff"]["w1"].astype(BF16),
              b1=params["ff"]["b1"].reshape(1, -1),
              w2=params["ff"]["w2"].astype(BF16),
              b2=params["ff"]["b2"].reshape(1, -1))
    ln = [dict(g=l["g"].reshape(1, -1), b=l["b"].reshape(1, -1))
          for l in params["ln"]]
    return dict(attn_self=self_attn(params["attn"][0]),
                attn_cross=cross_attn(params["attn"][1]),
                ff=ff, ln=ln)


# ---------------------------------------------------------------------------
# Deterministic parameter init (synthetic weights)
# ---------------------------------------------------------------------------

def init_params(key, d_model, d_ff):
    ks = jax.random.split(key, 20)
    ki = iter(range(20))

    def lin(din, dout):
        w = 0.02 * jax.random.normal(ks[next(ki)], (din, dout), F32)
        b = 0.01 * jax.random.normal(ks[next(ki)], (dout,), F32)
        return w, b

    def attn_params():
        wq, bq = lin(d_model, d_model)
        wk, bk = lin(d_model, d_model)
        wv, bv = lin(d_model, d_model)
        wo, bo = lin(d_model, d_model)
        return dict(wq=wq, bq=bq, wk=wk, bk=bk, wv=wv, bv=bv, wo=wo, bo=bo)

    attn = [attn_params(), attn_params()]
    w1, b1 = lin(d_model, d_ff)
    w2, b2 = lin(d_ff, d_model)
    ln = [dict(g=jnp.ones((d_model,), F32),
               b=jnp.zeros((d_model,), F32)) for _ in range(3)]
    return {"attn": attn, "ff": dict(w1=w1, b1=b1, w2=w2, b2=b2), "ln": ln}


# ---------------------------------------------------------------------------
# Pure-JAX reference (f32, HIGHEST precision) for correctness check
# ---------------------------------------------------------------------------

def ref_layer(in_ft, ft, b_masks, params, num_heads):
    def ln(x, g, b, eps=1e-6):
        mean = x.mean(-1, keepdims=True)
        d = x - mean
        var = (d * d).sum(-1, keepdims=True) / (x.shape[-1] - 1)
        return g * d / (jnp.sqrt(var) + eps) + b

    def mha(q, k, v, mask, p):
        B, Tq, D = q.shape
        Tk = k.shape[1]
        H = num_heads
        Dh = D // H
        Q = (q @ p["wq"] + p["bq"]).reshape(B, Tq, H, Dh).transpose(0, 2, 1, 3)
        K = (k @ p["wk"] + p["bk"]).reshape(B, Tk, H, Dh).transpose(0, 2, 1, 3)
        V = (v @ p["wv"] + p["bv"]).reshape(B, Tk, H, Dh).transpose(0, 2, 1, 3)
        s = jnp.einsum("bhqd,bhkd->bhqk", Q, K,
                       precision=HIGH) / math.sqrt(Dh)
        s = jnp.where(mask[:, None, :, :] > 0, s, -1e9)
        pa = jax.nn.softmax(s, axis=-1)
        ctx = jnp.einsum("bhqk,bhkd->bhqd", pa, V, precision=HIGH)
        ctx = ctx.transpose(0, 2, 1, 3).reshape(B, Tq, D)
        return ctx @ p["wo"] + p["bo"]

    c = in_ft["cap"]
    x = ln(c, params["ln"][0]["g"], params["ln"][0]["b"])
    c = c + mha(x, x, x, b_masks["query_mask"], params["attn"][0])
    x = ln(c, params["ln"][1]["g"], params["ln"][1]["b"])
    enc = ft["encoded_cap"]
    c = c + mha(x, enc, enc, b_masks["cap_mask"], params["attn"][1])
    x = ln(c, params["ln"][2]["g"], params["ln"][2]["b"])
    pf = params["ff"]
    c = c + jnp.maximum(x @ pf["w1"] + pf["b1"], 0.0) @ pf["w2"] + pf["b2"]
    return c


# ---------------------------------------------------------------------------

if __name__ == "__main__":
    B, Tq, Tk, D, H, Dff = 2, 8, 16, 32, 4, 64

    key = jax.random.PRNGKey(0)
    k_cap, k_enc, k_params = jax.random.split(key, 3)

    cap = jax.random.normal(k_cap, (B, Tq, D), F32)
    encoded_cap = jax.random.normal(k_enc, (B, Tk, D), F32)

    # masks: 1 = attend, 0 = padded key position; shape (B, 1, T_keys)
    query_mask = jnp.ones((B, 1, Tq), F32).at[1, 0, 6:].set(0.0)
    cap_mask = jnp.ones((B, 1, Tk), F32).at[1, 0, 12:].set(0.0)

    params = init_params(k_params, D, Dff)
    kparams = prepare_params(params)

    in_ft = {"cap": cap}
    ft = {"encoded_cap": encoded_cap}
    b_masks = {"query_mask": query_mask, "cap_mask": cap_mask}

    out = cap_encoder_layer(in_ft, ft, b_masks, kparams, H)
    jax.block_until_ready(out["cap"])

    ref = ref_layer(in_ft, ft, b_masks, params, H)
    np.testing.assert_allclose(np.asarray(out["cap"]), np.asarray(ref),
                               rtol=2e-2, atol=2e-2)

    print("KERNEL_OK")
</pallas_src>

<mosaic_0001>
module attributes {stable_mosaic.version = 11 : i64} {
  func.func @_self_attn_kernel(%arg0: i32, %arg1: memref<1x8x32xf32, #tpu.memory_space<vmem>>, %arg2: memref<1x1x8xf32, #tpu.memory_space<vmem>>, %arg3: memref<1x32xf32, #tpu.memory_space<vmem>>, %arg4: memref<1x32xf32, #tpu.memory_space<vmem>>, %arg5: memref<32x96xbf16, #tpu.memory_space<vmem>>, %arg6: memref<1x96xf32, #tpu.memory_space<vmem>>, %arg7: memref<32x32xf32, #tpu.memory_space<vmem>>, %arg8: memref<1x32xf32, #tpu.memory_space<vmem>>, %arg9: memref<1x8x32xf32, #tpu.memory_space<vmem>>) attributes {dimension_semantics = [#tpu.dimension_semantics<parallel>], iteration_bounds = array<i64: 2>, scalar_prefetch = 0 : i64, scratch_operands = 0 : i64, tpu.core_type = #tpu.core_type<tc>, window_params = [{transform_indices = @transform_0, window_bounds = array<i64: 1, 8, 32>}, {transform_indices = @transform_1, window_bounds = array<i64: 1, 1, 8>}, {pipeline_mode = #tpu.pipeline_mode<synchronous>, transform_indices = @transform_2, window_bounds = array<i64: 1, 32>}, {pipeline_mode = #tpu.pipeline_mode<synchronous>, transform_indices = @transform_3, window_bounds = array<i64: 1, 32>}, {pipeline_mode = #tpu.pipeline_mode<synchronous>, transform_indices = @transform_4, window_bounds = array<i64: 32, 96>}, {pipeline_mode = #tpu.pipeline_mode<synchronous>, transform_indices = @transform_5, window_bounds = array<i64: 1, 96>}, {pipeline_mode = #tpu.pipeline_mode<synchronous>, transform_indices = @transform_6, window_bounds = array<i64: 32, 32>}, {pipeline_mode = #tpu.pipeline_mode<synchronous>, transform_indices = @transform_7, window_bounds = array<i64: 1, 32>}, {transform_indices = @transform_8, window_bounds = array<i64: 1, 8, 32>}]} {
    %c0 = arith.constant 0 : index
    %c0_0 = arith.constant 0 : index
    %c0_1 = arith.constant 0 : index
    %0 = vector.load %arg1[%c0, %c0_0, %c0_1] : memref<1x8x32xf32, #tpu.memory_space<vmem>>, vector<1x8x32xf32>
    %1 = vector.shape_cast %0 : vector<1x8x32xf32> to vector<8x32xf32>
    %c0_2 = arith.constant 0 : index
    %c0_3 = arith.constant 0 : index
    %2 = vector.load %arg3[%c0_2, %c0_3] : memref<1x32xf32, #tpu.memory_space<vmem>>, vector<1x32xf32>
    %c0_4 = arith.constant 0 : index
    %c0_5 = arith.constant 0 : index
    %3 = vector.load %arg4[%c0_4, %c0_5] : memref<1x32xf32, #tpu.memory_space<vmem>>, vector<1x32xf32>
    %cst = arith.constant dense<0.000000e+00> : vector<8xf32>
    %4 = vector.multi_reduction <add>, %1, %cst [1] : vector<8x32xf32> to vector<8xf32>
    %5 = vector.shape_cast %4 : vector<8xf32> to vector<8x1xf32>
    %cst_6 = arith.constant 3.200000e+01 : f32
    %6 = vector.broadcast %cst_6 : f32 to vector<8x1xf32>
    %7 = arith.divf %5, %6 : vector<8x1xf32>
    %8 = vector.broadcast %7 : vector<8x1xf32> to vector<8x32xf32>
    %9 = arith.subf %1, %8 : vector<8x32xf32>
    %10 = arith.mulf %9, %9 : vector<8x32xf32>
    %cst_7 = arith.constant dense<0.000000e+00> : vector<8xf32>
    %11 = vector.multi_reduction <add>, %10, %cst_7 [1] : vector<8x32xf32> to vector<8xf32>
    %12 = vector.shape_cast %11 : vector<8xf32> to vector<8x1xf32>
    %cst_8 = arith.constant 0.0322580636 : f32
    %13 = vector.broadcast %cst_8 : f32 to vector<8x1xf32>
    %14 = arith.mulf %12, %13 : vector<8x1xf32>
    %15 = vector.broadcast %2 : vector<1x32xf32> to vector<8x32xf32>
    %16 = arith.mulf %15, %9 : vector<8x32xf32>
    %17 = math.sqrt %14 : vector<8x1xf32>
    %cst_9 = arith.constant 9.99999997E-7 : f32
    %18 = vector.broadcast %cst_9 : f32 to vector<8x1xf32>
    %19 = arith.addf %17, %18 : vector<8x1xf32>
    %20 = vector.broadcast %19 : vector<8x1xf32> to vector<8x32xf32>
    %21 = arith.divf %16, %20 : vector<8x32xf32>
    %22 = vector.broadcast %3 : vector<1x32xf32> to vector<8x32xf32>
    %23 = arith.addf %21, %22 : vector<8x32xf32>
    %24 = arith.truncf %23 : vector<8x32xf32> to vector<8x32xbf16>
    %c0_10 = arith.constant 0 : index
    %c0_11 = arith.constant 0 : index
    %25 = vector.load %arg5[%c0_10, %c0_11] : memref<32x96xbf16, #tpu.memory_space<vmem>>, vector<32x96xbf16>
    %cst_12 = arith.constant dense<0.000000e+00> : vector<8x96xf32>
    %26 = tpu.matmul %24, %25, %cst_12 {dimension_numbers = #tpu.dot_dimension_numbers<[1], [0], [0], [1], [0, 0, 1, 1], [], []>} : vector<8x32xbf16>, vector<32x96xbf16>, vector<8x96xf32> -> vector<8x96xf32>
    %c0_13 = arith.constant 0 : index
    %c0_14 = arith.constant 0 : index
    %27 = vector.load %arg6[%c0_13, %c0_14] : memref<1x96xf32, #tpu.memory_space<vmem>>, vector<1x96xf32>
    %28 = vector.broadcast %27 : vector<1x96xf32> to vector<8x96xf32>
    %29 = arith.addf %26, %28 : vector<8x96xf32>
    %30 = vector.extract_strided_slice %29 {offsets = [0, 0], sizes = [8, 32], strides = [1, 1]} : vector<8x96xf32> to vector<8x32xf32>
    %31 = vector.extract_strided_slice %29 {offsets = [0, 32], sizes = [8, 32], strides = [1, 1]} : vector<8x96xf32> to vector<8x32xf32>
    %32 = vector.extract_strided_slice %29 {offsets = [0, 64], sizes = [8, 32], strides = [1, 1]} : vector<8x96xf32> to vector<8x32xf32>
    %c0_15 = arith.constant 0 : index
    %c0_16 = arith.constant 0 : index
    %c0_17 = arith.constant 0 : index
    %33 = vector.load %arg2[%c0_15, %c0_16, %c0_17] : memref<1x1x8xf32, #tpu.memory_space<vmem>>, vector<1x1x8xf32>
    %34 = vector.shape_cast %33 : vector<1x1x8xf32> to vector<1x8xf32>
    %35 = arith.truncf %30 : vector<8x32xf32> to vector<8x32xbf16>
    %36 = arith.truncf %31 : vector<8x32xf32> to vector<8x32xbf16>
    %37 = arith.truncf %32 : vector<8x32xf32> to vector<8x32xbf16>
    %cst_18 = arith.constant 0.000000e+00 : f32
    %38 = vector.broadcast %cst_18 : f32 to vector<8x32xf32>
    %39 = vector.extract_strided_slice %35 {offsets = [0, 0], sizes = [8, 8], strides = [1, 1]} : vector<8x32xbf16> to vector<8x8xbf16>
    %40 = vector.extract_strided_slice %36 {offsets = [0, 0], sizes = [8, 8], strides = [1, 1]} : vector<8x32xbf16> to vector<8x8xbf16>
    %cst_19 = arith.constant dense<0.000000e+00> : vector<8x8xf32>
    %41 = tpu.matmul %39, %40, %cst_19 {dimension_numbers = #tpu.dot_dimension_numbers<[1], [1], [0], [0], [0, 0, 1, 0], [], []>} : vector<8x8xbf16>, vector<8x8xbf16>, vector<8x8xf32> -> vector<8x8xf32>
    %cst_20 = arith.constant 0.353553385 : f32
    %42 = vector.broadcast %cst_20 : f32 to vector<8x8xf32>
    %43 = arith.mulf %41, %42 : vector<8x8xf32>
    %44 = vector.broadcast %34 : vector<1x8xf32> to vector<8x8xf32>
    %45 = arith.addf %43, %44 : vector<8x8xf32>
    %cst_21 = arith.constant dense<0xFF800000> : vector<8xf32>
    %46 = vector.multi_reduction <maximumf>, %45, %cst_21 [1] : vector<8x8xf32> to vector<8xf32>
    %47 = vector.shape_cast %46 : vector<8xf32> to vector<8x1xf32>
    %48 = vector.broadcast %47 : vector<8x1xf32> to vector<8x8xf32>
    %49 = arith.subf %45, %48 : vector<8x8xf32>
    %50 = math.exp %49 : vector<8x8xf32>
    %cst_22 = arith.constant dense<0.000000e+00> : vector<8xf32>
    %51 = vector.multi_reduction <add>, %50, %cst_22 [1] : vector<8x8xf32> to vector<8xf32>
    %52 = vector.shape_cast %51 : vector<8xf32> to vector<8x1xf32>
    %53 = tpu.reciprocal %52 {approx = true} : vector<8x1xf32> -> vector<8x1xf32>
    %54 = vector.broadcast %53 : vector<8x1xf32> to vector<8x8xf32>
    %55 = arith.mulf %50, %54 : vector<8x8xf32>
    %56 = arith.truncf %55 : vector<8x8xf32> to vector<8x8xbf16>
    %57 = vector.extract_strided_slice %37 {offsets = [0, 0], sizes = [8, 8], strides = [1, 1]} : vector<8x32xbf16> to vector<8x8xbf16>
    %cst_23 = arith.constant dense<0.000000e+00> : vector<8x8xf32>
    %58 = tpu.matmul %56, %57, %cst_23 {dimension_numbers = #tpu.dot_dimension_numbers<[1], [0], [0], [1], [0, 0, 1, 1], [], []>} : vector<8x8xbf16>, vector<8x8xbf16>, vector<8x8xf32> -> vector<8x8xf32>
    %59 = arith.truncf %58 : vector<8x8xf32> to vector<8x8xbf16>
    %c0_24 = arith.constant 0 : index
    %c0_25 = arith.constant 0 : index
    %60 = vector.load %arg7[%c0_24, %c0_25] : memref<32x32xf32, #tpu.memory_space<vmem>>, vector<8x32xf32>
    %61 = arith.truncf %60 : vector<8x32xf32> to vector<8x32xbf16>
    %cst_26 = arith.constant dense<0.000000e+00> : vector<8x32xf32>
    %62 = tpu.matmul %59, %61, %cst_26 {dimension_numbers = #tpu.dot_dimension_numbers<[1], [0], [0], [1], [0, 0, 1, 1], [], []>} : vector<8x8xbf16>, vector<8x32xbf16>, vector<8x32xf32> -> vector<8x32xf32>
    %63 = arith.addf %38, %62 : vector<8x32xf32>
    %64 = vector.extract_strided_slice %35 {offsets = [0, 8], sizes = [8, 8], strides = [1, 1]} : vector<8x32xbf16> to vector<8x8xbf16>
    %65 = vector.extract_strided_slice %36 {offsets = [0, 8], sizes = [8, 8], strides = [1, 1]} : vector<8x32xbf16> to vector<8x8xbf16>
    %cst_27 = arith.constant dense<0.000000e+00> : vector<8x8xf32>
    %66 = tpu.matmul %64, %65, %cst_27 {dimension_numbers = #tpu.dot_dimension_numbers<[1], [1], [0], [0], [0, 0, 1, 0], [], []>} : vector<8x8xbf16>, vector<8x8xbf16>, vector<8x8xf32> -> vector<8x8xf32>
    %cst_28 = arith.constant 0.353553385 : f32
    %67 = vector.broadcast %cst_28 : f32 to vector<8x8xf32>
    %68 = arith.mulf %66, %67 : vector<8x8xf32>
    %69 = vector.broadcast %34 : vector<1x8xf32> to vector<8x8xf32>
    %70 = arith.addf %68, %69 : vector<8x8xf32>
    %cst_29 = arith.constant dense<0xFF800000> : vector<8xf32>
    %71 = vector.multi_reduction <maximumf>, %70, %cst_29 [1] : vector<8x8xf32> to vector<8xf32>
    %72 = vector.shape_cast %71 : vector<8xf32> to vector<8x1xf32>
    %73 = vector.broadcast %72 : vector<8x1xf32> to vector<8x8xf32>
    %74 = arith.subf %70, %73 : vector<8x8xf32>
    %75 = math.exp %74 : vector<8x8xf32>
    %cst_30 = arith.constant dense<0.000000e+00> : vector<8xf32>
    %76 = vector.multi_reduction <add>, %75, %cst_30 [1] : vector<8x8xf32> to vector<8xf32>
    %77 = vector.shape_cast %76 : vector<8xf32> to vector<8x1xf32>
    %78 = tpu.reciprocal %77 {approx = true} : vector<8x1xf32> -> vector<8x1xf32>
    %79 = vector.broadcast %78 : vector<8x1xf32> to vector<8x8xf32>
    %80 = arith.mulf %75, %79 : vector<8x8xf32>
    %81 = arith.truncf %80 : vector<8x8xf32> to vector<8x8xbf16>
    %82 = vector.extract_strided_slice %37 {offsets = [0, 8], sizes = [8, 8], strides = [1, 1]} : vector<8x32xbf16> to vector<8x8xbf16>
    %cst_31 = arith.constant dense<0.000000e+00> : vector<8x8xf32>
    %83 = tpu.matmul %81, %82, %cst_31 {dimension_numbers = #tpu.dot_dimension_numbers<[1], [0], [0], [1], [0, 0, 1, 1], [], []>} : vector<8x8xbf16>, vector<8x8xbf16>, vector<8x8xf32> -> vector<8x8xf32>
    %84 = arith.truncf %83 : vector<8x8xf32> to vector<8x8xbf16>
    %c8 = arith.constant 8 : index
    %c0_32 = arith.constant 0 : index
    %85 = vector.load %arg7[%c8, %c0_32] : memref<32x32xf32, #tpu.memory_space<vmem>>, vector<8x32xf32>
    %86 = arith.truncf %85 : vector<8x32xf32> to vector<8x32xbf16>
    %cst_33 = arith.constant dense<0.000000e+00> : vector<8x32xf32>
    %87 = tpu.matmul %84, %86, %cst_33 {dimension_numbers = #tpu.dot_dimension_numbers<[1], [0], [0], [1], [0, 0, 1, 1], [], []>} : vector<8x8xbf16>, vector<8x32xbf16>, vector<8x32xf32> -> vector<8x32xf32>
    %88 = arith.addf %63, %87 : vector<8x32xf32>
    %89 = vector.extract_strided_slice %35 {offsets = [0, 16], sizes = [8, 8], strides = [1, 1]} : vector<8x32xbf16> to vector<8x8xbf16>
    %90 = vector.extract_strided_slice %36 {offsets = [0, 16], sizes = [8, 8], strides = [1, 1]} : vector<8x32xbf16> to vector<8x8xbf16>
    %cst_34 = arith.constant dense<0.000000e+00> : vector<8x8xf32>
    %91 = tpu.matmul %89, %90, %cst_34 {dimension_numbers = #tpu.dot_dimension_numbers<[1], [1], [0], [0], [0, 0, 1, 0], [], []>} : vector<8x8xbf16>, vector<8x8xbf16>, vector<8x8xf32> -> vector<8x8xf32>
    %cst_35 = arith.constant 0.353553385 : f32
    %92 = vector.broadcast %cst_35 : f32 to vector<8x8xf32>
    %93 = arith.mulf %91, %92 : vector<8x8xf32>
    %94 = vector.broadcast %34 : vector<1x8xf32> to vector<8x8xf32>
    %95 = arith.addf %93, %94 : vector<8x8xf32>
    %cst_36 = arith.constant dense<0xFF800000> : vector<8xf32>
    %96 = vector.multi_reduction <maximumf>, %95, %cst_36 [1] : vector<8x8xf32> to vector<8xf32>
    %97 = vector.shape_cast %96 : vector<8xf32> to vector<8x1xf32>
    %98 = vector.broadcast %97 : vector<8x1xf32> to vector<8x8xf32>
    %99 = arith.subf %95, %98 : vector<8x8xf32>
    %100 = math.exp %99 : vector<8x8xf32>
    %cst_37 = arith.constant dense<0.000000e+00> : vector<8xf32>
    %101 = vector.multi_reduction <add>, %100, %cst_37 [1] : vector<8x8xf32> to vector<8xf32>
    %102 = vector.shape_cast %101 : vector<8xf32> to vector<8x1xf32>
    %103 = tpu.reciprocal %102 {approx = true} : vector<8x1xf32> -> vector<8x1xf32>
    %104 = vector.broadcast %103 : vector<8x1xf32> to vector<8x8xf32>
    %105 = arith.mulf %100, %104 : vector<8x8xf32>
    %106 = arith.truncf %105 : vector<8x8xf32> to vector<8x8xbf16>
    %107 = vector.extract_strided_slice %37 {offsets = [0, 16], sizes = [8, 8], strides = [1, 1]} : vector<8x32xbf16> to vector<8x8xbf16>
    %cst_38 = arith.constant dense<0.000000e+00> : vector<8x8xf32>
    %108 = tpu.matmul %106, %107, %cst_38 {dimension_numbers = #tpu.dot_dimension_numbers<[1], [0], [0], [1], [0, 0, 1, 1], [], []>} : vector<8x8xbf16>, vector<8x8xbf16>, vector<8x8xf32> -> vector<8x8xf32>
    %109 = arith.truncf %108 : vector<8x8xf32> to vector<8x8xbf16>
    %c16 = arith.constant 16 : index
    %c0_39 = arith.constant 0 : index
    %110 = vector.load %arg7[%c16, %c0_39] : memref<32x32xf32, #tpu.memory_space<vmem>>, vector<8x32xf32>
    %111 = arith.truncf %110 : vector<8x32xf32> to vector<8x32xbf16>
    %cst_40 = arith.constant dense<0.000000e+00> : vector<8x32xf32>
    %112 = tpu.matmul %109, %111, %cst_40 {dimension_numbers = #tpu.dot_dimension_numbers<[1], [0], [0], [1], [0, 0, 1, 1], [], []>} : vector<8x8xbf16>, vector<8x32xbf16>, vector<8x32xf32> -> vector<8x32xf32>
    %113 = arith.addf %88, %112 : vector<8x32xf32>
    %114 = vector.extract_strided_slice %35 {offsets = [0, 24], sizes = [8, 8], strides = [1, 1]} : vector<8x32xbf16> to vector<8x8xbf16>
    %115 = vector.extract_strided_slice %36 {offsets = [0, 24], sizes = [8, 8], strides = [1, 1]} : vector<8x32xbf16> to vector<8x8xbf16>
    %cst_41 = arith.constant dense<0.000000e+00> : vector<8x8xf32>
    %116 = tpu.matmul %114, %115, %cst_41 {dimension_numbers = #tpu.dot_dimension_numbers<[1], [1], [0], [0], [0, 0, 1, 0], [], []>} : vector<8x8xbf16>, vector<8x8xbf16>, vector<8x8xf32> -> vector<8x8xf32>
    %cst_42 = arith.constant 0.353553385 : f32
    %117 = vector.broadcast %cst_42 : f32 to vector<8x8xf32>
    %118 = arith.mulf %116, %117 : vector<8x8xf32>
    %119 = vector.broadcast %34 : vector<1x8xf32> to vector<8x8xf32>
    %120 = arith.addf %118, %119 : vector<8x8xf32>
    %cst_43 = arith.constant dense<0xFF800000> : vector<8xf32>
    %121 = vector.multi_reduction <maximumf>, %120, %cst_43 [1] : vector<8x8xf32> to vector<8xf32>
    %122 = vector.shape_cast %121 : vector<8xf32> to vector<8x1xf32>
    %123 = vector.broadcast %122 : vector<8x1xf32> to vector<8x8xf32>
    %124 = arith.subf %120, %123 : vector<8x8xf32>
    %125 = math.exp %124 : vector<8x8xf32>
    %cst_44 = arith.constant dense<0.000000e+00> : vector<8xf32>
    %126 = vector.multi_reduction <add>, %125, %cst_44 [1] : vector<8x8xf32> to vector<8xf32>
    %127 = vector.shape_cast %126 : vector<8xf32> to vector<8x1xf32>
    %128 = tpu.reciprocal %127 {approx = true} : vector<8x1xf32> -> vector<8x1xf32>
    %129 = vector.broadcast %128 : vector<8x1xf32> to vector<8x8xf32>
    %130 = arith.mulf %125, %129 : vector<8x8xf32>
    %131 = arith.truncf %130 : vector<8x8xf32> to vector<8x8xbf16>
    %132 = vector.extract_strided_slice %37 {offsets = [0, 24], sizes = [8, 8], strides = [1, 1]} : vector<8x32xbf16> to vector<8x8xbf16>
    %cst_45 = arith.constant dense<0.000000e+00> : vector<8x8xf32>
    %133 = tpu.matmul %131, %132, %cst_45 {dimension_numbers = #tpu.dot_dimension_numbers<[1], [0], [0], [1], [0, 0, 1, 1], [], []>} : vector<8x8xbf16>, vector<8x8xbf16>, vector<8x8xf32> -> vector<8x8xf32>
    %134 = arith.truncf %133 : vector<8x8xf32> to vector<8x8xbf16>
    %c24 = arith.constant 24 : index
    %c0_46 = arith.constant 0 : index
    %135 = vector.load %arg7[%c24, %c0_46] : memref<32x32xf32, #tpu.memory_space<vmem>>, vector<8x32xf32>
    %136 = arith.truncf %135 : vector<8x32xf32> to vector<8x32xbf16>
    %cst_47 = arith.constant dense<0.000000e+00> : vector<8x32xf32>
    %137 = tpu.matmul %134, %136, %cst_47 {dimension_numbers = #tpu.dot_dimension_numbers<[1], [0], [0], [1], [0, 0, 1, 1], [], []>} : vector<8x8xbf16>, vector<8x32xbf16>, vector<8x32xf32> -> vector<8x32xf32>
    %138 = arith.addf %113, %137 : vector<8x32xf32>
    %139 = arith.addf %1, %138 : vector<8x32xf32>
    %c0_48 = arith.constant 0 : index
    %c0_49 = arith.constant 0 : index
    %140 = vector.load %arg8[%c0_48, %c0_49] : memref<1x32xf32, #tpu.memory_space<vmem>>, vector<1x32xf32>
    %141 = vector.broadcast %140 : vector<1x32xf32> to vector<8x32xf32>
    %142 = arith.addf %139, %141 : vector<8x32xf32>
    %c0_50 = arith.constant 0 : index
    %c0_51 = arith.constant 0 : index
    %c0_52 = arith.constant 0 : index
    %143 = vector.load %arg9[%c0_50, %c0_51, %c0_52] : memref<1x8x32xf32, #tpu.memory_space<vmem>>, vector<1x8x32xf32>
    %144 = vector.shape_cast %143 : vector<1x8x32xf32> to vector<8x32xf32>
    %145 = vector.shape_cast %142 : vector<8x32xf32> to vector<1x8x32xf32>
    tpu.vector_store %arg9[%c0_50, %c0_51, %c0_52], %145 {strides = array<i32>} : memref<1x8x32xf32, #tpu.memory_space<vmem>>, vector<1x8x32xf32>,
    return
  }
  func.func @transform_0(%arg0: i32) -> (i32, i32, i32) {
    %c0_i32 = arith.constant 0 : i32
    %c0_i32_0 = arith.constant 0 : i32
    %c0_i32_1 = arith.constant 0 : i32
    return %arg0, %c0_i32, %c0_i32_0 : i32, i32, i32
  }
  func.func @transform_1(%arg0: i32) -> (i32, i32, i32) {
    %c0_i32 = arith.constant 0 : i32
    %c0_i32_0 = arith.constant 0 : i32
    %c0_i32_1 = arith.constant 0 : i32
    return %arg0, %c0_i32, %c0_i32_0 : i32, i32, i32
  }
  func.func @transform_2(%arg0: i32) -> (i32, i32) {
    %c0_i32 = arith.constant 0 : i32
    %c0_i32_0 = arith.constant 0 : i32
    %c0_i32_1 = arith.constant 0 : i32
    return %c0_i32, %c0_i32_0 : i32, i32
  }
  func.func @transform_3(%arg0: i32) -> (i32, i32) {
    %c0_i32 = arith.constant 0 : i32
    %c0_i32_0 = arith.constant 0 : i32
    %c0_i32_1 = arith.constant 0 : i32
    return %c0_i32, %c0_i32_0 : i32, i32
  }
  func.func @transform_4(%arg0: i32) -> (i32, i32) {
    %c0_i32 = arith.constant 0 : i32
    %c0_i32_0 = arith.constant 0 : i32
    %c0_i32_1 = arith.constant 0 : i32
    return %c0_i32, %c0_i32_0 : i32, i32
  }
  func.func @transform_5(%arg0: i32) -> (i32, i32) {
    %c0_i32 = arith.constant 0 : i32
    %c0_i32_0 = arith.constant 0 : i32
    %c0_i32_1 = arith.constant 0 : i32
    return %c0_i32, %c0_i32_0 : i32, i32
  }
  func.func @transform_6(%arg0: i32) -> (i32, i32) {
    %c0_i32 = arith.constant 0 : i32
    %c0_i32_0 = arith.constant 0 : i32
    %c0_i32_1 = arith.constant 0 : i32
    return %c0_i32, %c0_i32_0 : i32, i32
  }
  func.func @transform_7(%arg0: i32) -> (i32, i32) {
    %c0_i32 = arith.constant 0 : i32
    %c0_i32_0 = arith.constant 0 : i32
    %c0_i32_1 = arith.constant 0 : i32
    return %c0_i32, %c0_i32_0 : i32, i32
  }
  func.func @transform_8(%arg0: i32) -> (i32, i32, i32) {
    %c0_i32 = arith.constant 0 : i32
    %c0_i32_0 = arith.constant 0 : i32
    %c0_i32_1 = arith.constant 0 : i32
    return %arg0, %c0_i32, %c0_i32_0 : i32, i32, i32
  }
}

</mosaic_0001>

<llo_original>
// kernel: tpu_custom_call.1
$region0: #{tpu_custom_call.1}
  #allocation0 [shape = 'u32[]', space=smem, size = 0x4, offset = 0x4, fixed_abs, tag = 'smem constant byte address 0x4 - core index']
  #allocation1 [shape = 'u32[72,128]{1,0:T(1,128)}', space=vmem, size = 0x9000, scoped, tag = 'internal scratch']
  %s0 = inlined_call_operand.hbm [shape: f32[2,8,32], index: 0, kind: input, shape index: {}]
  %s1 = inlined_call_operand.hbm [shape: f32[2,1,8], index: 1, kind: input, shape index: {}]
  %s2 = inlined_call_operand.vmem [shape: f32[1,32], index: 2, kind: input, shape index: {}]
  %s3 = inlined_call_operand.vmem [shape: f32[1,32], index: 3, kind: input, shape index: {}]
  %s4 = inlined_call_operand.hbm [shape: bf16[32,96], index: 4, kind: input, shape index: {}]
  %s5 = inlined_call_operand.vmem [shape: f32[1,96], index: 5, kind: input, shape index: {}]
  %s6 = inlined_call_operand.hbm [shape: f32[32,32], index: 6, kind: input, shape index: {}]
  %s7 = inlined_call_operand.vmem [shape: f32[1,32], index: 7, kind: input, shape index: {}]
  %s8 = inlined_call_operand.hbm [shape: f32[2,8,32], index: 8, kind: output, shape index: {}]
  %s9 = sld [smem:[#allocation0]]
  $region81: #{tpu_custom_call.1} parent=0
    _
  %s11 = ssub.s32 1, %s9
  %s12 = scalar_select 0, %s11, %s9
  $region1: #{tpu_custom_call.1} parent=0
    #allocation2 [shape = 'u8[8192]{0}', space=vmem, size = 0x2000, scoped, tag = 'input window, operand 0']
    #allocation3 [shape = 's32[2]{0}', space=sflag, size = 0x8, scoped, tag = 'scoped memory for tpu_custom_call.1']
    #allocation4 [shape = 's32[2]{0}', space=sflag, size = 0x8, scoped, tag = 'scoped memory for tpu_custom_call.1']
    #allocation5 [shape = 'u8[1024]{0}', space=vmem, size = 0x400, scoped, tag = 'input window, operand 1']
    #allocation6 [shape = 's32[2]{0}', space=sflag, size = 0x8, scoped, tag = 'scoped memory for tpu_custom_call.1']
    #allocation7 [shape = 'u8[8192]{0}', space=vmem, size = 0x2000, scoped, tag = 'input window, operand 4, single buffered']
    #allocation8 [shape = 'u8[16384]{0}', space=vmem, size = 0x4000, scoped, tag = 'input window, operand 6, single buffered']
    #allocation9 [shape = 's32[1]{0}', space=sflag, size = 0x4, scoped, tag = 'scoped memory for tpu_custom_call.1']
    #allocation10 [shape = 'u8[8192]{0}', space=vmem, size = 0x2000, scoped, tag = 'output window, operand 0']
    %13 = vsyncpa [#allocation3], 0
    %s14 = scalar_lea.sflag [#allocation3], 1
    %15 = vsyncpa %s14, 0
    %16 = vsyncpa [#allocation6], 0
    %s17 = scalar_lea.sflag [#allocation6], 1
    %18 = vsyncpa %s17, 0
    %19 = vsyncpa [#allocation9], 0
    %20 = vsyncpa [#allocation4], 0
    %s21 = scalar_lea.sflag [#allocation4], 1
    %22 = vsyncpa %s21, 0
    loop: start=0, step=1, limit=4
    $region2: #{tpu_custom_call.1} parent=1 // loop_pre_header
      _
    $region3: #{tpu_custom_call.1} parent=1 // loop_header
      %s24 = sphi 0, %s28
      %p25 = scmp.ge.s32.totalorder %s24, 4
      %s34 = sphi 0, %s36
      %s37 = sphi 0, %s34
      %s38 = sphi 0, %s37
      %s54 = sphi 0, %s38
      %s60 = sphi 0, %s62
      %s63 = sphi 0, %s60
      %s64 = sphi 0, %s63
      %s80 = sphi 0, %s64
      %s84 = sphi 0, %s84
      %s86 = sphi 0, %s84
      %s87 = sphi 0, %s86
      %s101 = sphi 0, %s87
      %s105 = sphi 0, %s105
      %s107 = sphi 0, %s105
      %s108 = sphi 0, %s107
      %s122 = sphi 0, %s108
      %s126 = sphi 0, %s126
      %s128 = sphi 0, %s126
      %s129 = sphi 0, %s128
      %s143 = sphi 0, %s129
      %s147 = sphi 0, %s147
      %s149 = sphi 0, %s147
      %s150 = sphi 0, %s149
      %s164 = sphi 0, %s150
      %s168 = sphi 0, %s168
      %s170 = sphi 0, %s168
      %s171 = sphi 0, %s170
      %s185 = sphi 0, %s171
      %s189 = sphi 0, %s189
      %s191 = sphi 0, %s189
      %s192 = sphi 0, %s191
      %s206 = sphi 0, %s192
      %s212 = sphi 0, %s214
      %s215 = sphi 0, %s212
      %s216 = sphi 0, %s215
      %s232 = sphi 0, %s216
    $region4: #{tpu_custom_call.1} parent=1 // loop_header_branch
      %27 = sbr.rel (%p25) target = $region8
    $region5: #{tpu_custom_call.1} parent=1 // loop_body
      %s29 = ssub.s32 %s24, 1
      %s30 = ssub.s32 %s24, 2
      %s31 = sadd.s32 %s24, 1
      %s32 = ssub.s32 %s24, %s31
      %p33 = scmp.eq.s32.totalorder %s32, 0
      %s35 = sadd.s32 %s34, 1
      %s36 = scalar_select %p33, %s34, %s35
      %p39 = pneg %p33
      %p40 = scmp.eq.s32.totalorder %s24, 1
      %p41 = por %p39, %p40
      %p42 = scmp.ne.s32.totalorder %s34, %s37
      %p43 = scmp.eq.s32.totalorder %s24, 0
      %p44 = por %p42, %p43
      %p45 = scmp.ne.s32.totalorder %s34, %s37
      %p46 = scmp.eq.s32.totalorder %s29, 1
      %p47 = por %p45, %p46
      %p48 = scmp.ne.s32.totalorder %s37, %s38
      %p49 = scmp.eq.s32.totalorder %s29, 0
      %p50 = por %p48, %p49
      %p51 = scmp.ne.s32.totalorder %s37, %s38
      %p52 = scmp.eq.s32.totalorder %s30, 1
      %p53 = por %p51, %p52
      %p55 = scmp.ne.s32.totalorder %s38, %s54
      %p56 = scmp.eq.s32.totalorder %s30, 0
      %p57 = por %p55, %p56
      %s58 = ssub.s32 %s24, %s31
      %p59 = scmp.eq.s32.totalorder %s58, 0
      %s61 = sadd.s32 %s60, 1
      %s62 = scalar_select %p59, %s60, %s61
      %p65 = pneg %p59
      %p66 = scmp.eq.s32.totalorder %s24, 1
      %p67 = por %p65, %p66
      %p68 = scmp.ne.s32.totalorder %s60, %s63
      %p69 = scmp.eq.s32.totalorder %s24, 0
      %p70 = por %p68, %p69
      %p71 = scmp.ne.s32.totalorder %s60, %s63
      %p72 = scmp.eq.s32.totalorder %s29, 1
      %p73 = por %p71, %p72
      %p74 = scmp.ne.s32.totalorder %s63, %s64
      %p75 = scmp.eq.s32.totalorder %s29, 0
      %p76 = por %p74, %p75
      %p77 = scmp.ne.s32.totalorder %s63, %s64
      %p78 = scmp.eq.s32.totalorder %s30, 1
      %p79 = por %p77, %p78
      %p81 = scmp.ne.s32.totalorder %s64, %s80
      %p82 = scmp.eq.s32.totalorder %s30, 0
      %p83 = por %p81, %p82
      %s85 = sadd.s32 %s84, 1
      %p88 = scmp.eq.s32.totalorder %s24, 1
      %p89 = scmp.ne.s32.totalorder %s84, %s86
      %p90 = scmp.eq.s32.totalorder %s24, 0
      %p91 = por %p89, %p90
      %p92 = scmp.ne.s32.totalorder %s84, %s86
      %p93 = scmp.eq.s32.totalorder %s29, 1
      %p94 = por %p92, %p93
      %p95 = scmp.ne.s32.totalorder %s86, %s87
      %p96 = scmp.eq.s32.totalorder %s29, 0
      %p97 = por %p95, %p96
      %p98 = scmp.ne.s32.totalorder %s86, %s87
      %p99 = scmp.eq.s32.totalorder %s30, 1
      %p100 = por %p98, %p99
      %p102 = scmp.ne.s32.totalorder %s87, %s101
      %p103 = scmp.eq.s32.totalorder %s30, 0
      %p104 = por %p102, %p103
      %s106 = sadd.s32 %s105, 1
      %p109 = scmp.eq.s32.totalorder %s24, 1
      %p110 = scmp.ne.s32.totalorder %s105, %s107
      %p111 = scmp.eq.s32.totalorder %s24, 0
      %p112 = por %p110, %p111
      %p113 = scmp.ne.s32.totalorder %s105, %s107
      %p114 = scmp.eq.s32.totalorder %s29, 1
      %p115 = por %p113, %p114
      %p116 = scmp.ne.s32.totalorder %s107, %s108
      %p117 = scmp.eq.s32.totalorder %s29, 0
      %p118 = por %p116, %p117
      %p119 = scmp.ne.s32.totalorder %s107, %s108
      %p120 = scmp.eq.s32.totalorder %s30, 1
      %p121 = por %p119, %p120
      %p123 = scmp.ne.s32.totalorder %s108, %s122
      %p124 = scmp.eq.s32.totalorder %s30, 0
      %p125 = por %p123, %p124
      %s127 = sadd.s32 %s126, 1
      %p130 = scmp.eq.s32.totalorder %s24, 1
      %p131 = scmp.ne.s32.totalorder %s126, %s128
      %p132 = scmp.eq.s32.totalorder %s24, 0
      %p133 = por %p131, %p132
      %p134 = scmp.ne.s32.totalorder %s126, %s128
      %p135 = scmp.eq.s32.totalorder %s29, 1
      %p136 = por %p134, %p135
      %p137 = scmp.ne.s32.totalorder %s128, %s129
      %p138 = scmp.eq.s32.totalorder %s29, 0
      %p139 = por %p137, %p138
      %p140 = scmp.ne.s32.totalorder %s128, %s129
      %p141 = scmp.eq.s32.totalorder %s30, 1
      %p142 = por %p140, %p141
      %p144 = scmp.ne.s32.totalorder %s129, %s143
      %p145 = scmp.eq.s32.totalorder %s30, 0
      %p146 = por %p144, %p145
      %s148 = sadd.s32 %s147, 1
      %p151 = scmp.eq.s32.totalorder %s24, 1
      %p152 = scmp.ne.s32.totalorder %s147, %s149
      %p153 = scmp.eq.s32.totalorder %s24, 0
      %p154 = por %p152, %p153
      %p155 = scmp.ne.s32.totalorder %s147, %s149
      %p156 = scmp.eq.s32.totalorder %s29, 1
      %p157 = por %p155, %p156
      %p158 = scmp.ne.s32.totalorder %s149, %s150
      %p159 = scmp.eq.s32.totalorder %s29, 0
      %p160 = por %p158, %p159
      %p161 = scmp.ne.s32.totalorder %s149, %s150
      %p162 = scmp.eq.s32.totalorder %s30, 1
      %p163 = por %p161, %p162
      %p165 = scmp.ne.s32.totalorder %s150, %s164
      %p166 = scmp.eq.s32.totalorder %s30, 0
      %p167 = por %p165, %p166
      %s169 = sadd.s32 %s168, 1
      %p172 = scmp.eq.s32.totalorder %s24, 1
      %p173 = scmp.ne.s32.totalorder %s168, %s170
      %p174 = scmp.eq.s32.totalorder %s24, 0
      %p175 = por %p173, %p174
      %p176 = scmp.ne.s32.totalorder %s168, %s170
      %p177 = scmp.eq.s32.totalorder %s29, 1
      %p178 = por %p176, %p177
      %p179 = scmp.ne.s32.totalorder %s170, %s171
      %p180 = scmp.eq.s32.totalorder %s29, 0
      %p181 = por %p179, %p180
      %p182 = scmp.ne.s32.totalorder %s170, %s171
      %p183 = scmp.eq.s32.totalorder %s30, 1
      %p184 = por %p182, %p183
      %p186 = scmp.ne.s32.totalorder %s171, %s185
      %p187 = scmp.eq.s32.totalorder %s30, 0
      %p188 = por %p186, %p187
      %s190 = sadd.s32 %s189, 1
      %p193 = scmp.eq.s32.totalorder %s24, 1
      %p194 = scmp.ne.s32.totalorder %s189, %s191
      %p195 = scmp.eq.s32.totalorder %s24, 0
      %p196 = por %p194, %p195
      %p197 = scmp.ne.s32.totalorder %s189, %s191
      %p198 = scmp.eq.s32.totalorder %s29, 1
      %p199 = por %p197, %p198
      %p200 = scmp.ne.s32.totalorder %s191, %s192
      %p201 = scmp.eq.s32.totalorder %s29, 0
      %p202 = por %p200, %p201
      %p203 = scmp.ne.s32.totalorder %s191, %s192
      %p204 = scmp.eq.s32.totalorder %s30, 1
      %p205 = por %p203, %p204
      %p207 = scmp.ne.s32.totalorder %s192, %s206
      %p208 = scmp.eq.s32.totalorder %s30, 0
      %p209 = por %p207, %p208
      %s210 = ssub.s32 %s24, %s31
      %p211 = scmp.eq.s32.totalorder %s210, 0
      %s213 = sadd.s32 %s212, 1
      %s214 = scalar_select %p211, %s212, %s213
      %p217 = pneg %p211
      %p218 = scmp.eq.s32.totalorder %s24, 1
      %p219 = por %p217, %p218
      %p220 = scmp.ne.s32.totalorder %s212, %s215
      %p221 = scmp.eq.s32.totalorder %s24, 0
      %p222 = por %p220, %p221
      %p223 = scmp.ne.s32.totalorder %s212, %s215
      %p224 = scmp.eq.s32.totalorder %s29, 1
      %p225 = por %p223, %p224
      %p226 = scmp.ne.s32.totalorder %s215, %s216
      %p227 = scmp.eq.s32.totalorder %s29, 0
      %p228 = por %p226, %p227
      %p229 = scmp.ne.s32.totalorder %s215, %s216
      %p230 = scmp.eq.s32.totalorder %s30, 1
      %p231 = por %p229, %p230
      %p233 = scmp.ne.s32.totalorder %s216, %s232
      %p234 = scmp.eq.s32.totalorder %s30, 0
      %p235 = por %p233, %p234
      %p236 = scmp.le.s32.totalorder 1, %s24
      %p237 = scmp.lt.s32.totalorder %s24, 3
      %p238 = pnand %p236, %p237
      %p239 = pneg %p238
      // Predicated region
      $region9: #{tpu_custom_call.1} parent=5 // pred_check
        _
      $region10: #{tpu_custom_call.1} parent=5 // pred_check_branch
        %241 = sbr.rel (%p238) target = $region12
      $region11: #{tpu_custom_call.1} parent=5 // pred_region
        %s242 = ssub.s32 %s24, 1
        // Predicated region
        $region13: #{tpu_custom_call.1} parent=11 // pred_check
          %p243 = pneg %p97
        $region14: #{tpu_custom_call.1} parent=11 // pred_check_branch
          %245 = sbr.rel (%p243) target = $region16
        $region15: #{tpu_custom_call.1} parent=11 // pred_region
          _
        $region16: #{tpu_custom_call.1} parent=11 // pred_fallthru
          _
        // Predicated region
        $region17: #{tpu_custom_call.1} parent=11 // pred_check
          %p246 = pneg %p118
        $region18: #{tpu_custom_call.1} parent=11 // pred_check_branch
          %248 = sbr.rel (%p246) target = $region20
        $region19: #{tpu_custom_call.1} parent=11 // pred_region
          _
        $region20: #{tpu_custom_call.1} parent=11 // pred_fallthru
          _
        // Predicated region
        $region21: #{tpu_custom_call.1} parent=11 // pred_check
          %p249 = pneg %p139
        $region22: #{tpu_custom_call.1} parent=11 // pred_check_branch
          %251 = sbr.rel (%p249) target = $region24
        $region23: #{tpu_custom_call.1} parent=11 // pred_region
          %253 = vsyncadd [#allocation6], 0
          %s254 = sshll.u32 %s4, 4
          %s255 = int_to_ptr.hbm [resolvable:$true] %s254
          %s256 = sshll.u32 [#allocation7], 4
          %s257 = int_to_ptr.vmem [resolvable:$true] %s256
          %262 = dma.hbm_to_vmem [thread:$0]  %s255, 256, %s257, [#allocation6], 64, 64, 4
        $region24: #{tpu_custom_call.1} parent=11 // pred_fallthru
          _
        // Predicated region
        $region25: #{tpu_custom_call.1} parent=11 // pred_check
          %p263 = pneg %p160
        $region26: #{tpu_custom_call.1} parent=11 // pred_check_branch
          %265 = sbr.rel (%p263) target = $region28
        $region27: #{tpu_custom_call.1} parent=11 // pred_region
          _
        $region28: #{tpu_custom_call.1} parent=11 // pred_fallthru
          _
        // Predicated region
        $region29: #{tpu_custom_call.1} parent=11 // pred_check
          %p266 = pneg %p181
        $region30: #{tpu_custom_call.1} parent=11 // pred_check_branch
          %268 = sbr.rel (%p266) target = $region32
        $region31: #{tpu_custom_call.1} parent=11 // pred_region
          %270 = vsyncadd [#allocation9], 0
          %s271 = sshll.u32 %s6, 4
          %s272 = int_to_ptr.hbm [resolvable:$true] %s271
          %s273 = sshll.u32 [#allocation8], 4
          %s274 = int_to_ptr.vmem [resolvable:$true] %s273
          %279 = dma.hbm_to_vmem [thread:$0]  %s272, 512, %s274, [#allocation9], 128, 128, 8
        $region32: #{tpu_custom_call.1} parent=11 // pred_fallthru
          _
        // Predicated region
        $region33: #{tpu_custom_call.1} parent=11 // pred_check
          %p280 = pneg %p202
        $region34: #{tpu_custom_call.1} parent=11 // pred_check_branch
          %282 = sbr.rel (%p280) target = $region36
        $region35: #{tpu_custom_call.1} parent=11 // pred_region
          _
        $region36: #{tpu_custom_call.1} parent=11 // pred_fallthru
          _
      $region12: #{tpu_custom_call.1} parent=5 // pred_fallthru
        _
      %p283 = scmp.lt.s32.totalorder %s24, 2
      // Predicated region
      $region37: #{tpu_custom_call.1} parent=5 // pred_check
        %p284 = pneg %p283
      $region38: #{tpu_custom_call.1} parent=5 // pred_check_branch
        %286 = sbr.rel (%p284) target = $region40
      $region39: #{tpu_custom_call.1} parent=5 // pred_region
        // Predicated region
        $region41: #{tpu_custom_call.1} parent=39 // pred_check
          %p287 = pneg %p44
        $region42: #{tpu_custom_call.1} parent=39 // pred_check_branch
          %289 = sbr.rel (%p287) target = $region44
        $region43: #{tpu_custom_call.1} parent=39 // pred_region
          %s290 = sand.u32 %s34, 1
          %s291 = scalar_lea.sflag [#allocation3], %s290
          %s292 = sand.u32 %s34, 1
          %s293 = smul.addr %s292, 8
          %s294 = scalar_lea.vmem [#allocation2], %s293
          %296 = vsyncadd %s291, 0
          %s297 = smul.addr %s24, 8
          %s298 = scalar_lea.hbm %s0, %s297
          %s300 = sshll.u32 %s298, 4
          %s301 = int_to_ptr.hbm [resolvable:$true] %s300
          %s302 = sshll.u32 %s294, 4
          %s303 = int_to_ptr.vmem [resolvable:$true] %s302
          %305 = dma.hbm_to_vmem [thread:$0]  %s301, 128, %s303, %s291
        $region44: #{tpu_custom_call.1} parent=39 // pred_fallthru
          _
        // Predicated region
        $region45: #{tpu_custom_call.1} parent=39 // pred_check
          %p306 = pneg %p70
        $region46: #{tpu_custom_call.1} parent=39 // pred_check_branch
          %308 = sbr.rel (%p306) target = $region48
        $region47: #{tpu_custom_call.1} parent=39 // pred_region
          %s309 = sand.u32 %s24, 1
          %s310 = scalar_lea.sflag [#allocation6], %s309
          %s311 = sand.u32 %s60, 1
          %s312 = scalar_lea.vmem [#allocation5], %s311
          %314 = vsyncadd %s310, 0
          %s315 = scalar_lea.hbm %s1, %s24
          %s317 = sshll.u32 %s315, 4
          %s318 = int_to_ptr.hbm [resolvable:$true] %s317
          %s319 = sshll.u32 %s312, 4
          %s320 = int_to_ptr.vmem [resolvable:$true] %s319
          %322 = dma.hbm_to_vmem [thread:$0]  %s318, 16, %s320, %s310
        $region48: #{tpu_custom_call.1} parent=39 // pred_fallthru
          _
      $region40: #{tpu_custom_call.1} parent=5 // pred_fallthru
        _
      %p323 = scmp.le.s32.totalorder 1, %s24
      %p324 = scmp.lt.s32.totalorder %s24, 3
      %p325 = pnand %p323, %p324
      %p326 = pneg %p325
      // Predicated region
      $region49: #{tpu_custom_call.1} parent=5 // pred_check
        _
      $region50: #{tpu_custom_call.1} parent=5 // pred_check_branch
        %328 = sbr.rel (%p325) target = $region52
      $region51: #{tpu_custom_call.1} parent=5 // pred_region
        %s329 = ssub.s32 %s24, 1
        %s330 = sand.u32 %s37, 1
        %s331 = scalar_lea.sflag [#allocation3], %s330
        %s332 = sand.u32 %s37, 1
        %s333 = smul.addr %s332, 8
        %s334 = scalar_lea.vmem [#allocation2], %s333
        // Predicated region
        $region53: #{tpu_custom_call.1} parent=51 // pred_check
          %p335 = pneg %p50
        $region54: #{tpu_custom_call.1} parent=51 // pred_check_branch
          %337 = sbr.rel (%p335) target = $region56
        $region55: #{tpu_custom_call.1} parent=51 // pred_region
          %339 = dma.done %s331, 128
        $region56: #{tpu_custom_call.1} parent=51 // pred_fallthru
          _
        %s340 = sand.u32 %s29, 1
        %s341 = scalar_lea.sflag [#allocation6], %s340
        %s342 = sand.u32 %s63, 1
        %s343 = scalar_lea.vmem [#allocation5], %s342
        // Predicated region
        $region57: #{tpu_custom_call.1} parent=51 // pred_check
          %p344 = pneg %p76
        $region58: #{tpu_custom_call.1} parent=51 // pred_check_branch
          %346 = sbr.rel (%p344) target = $region60
        $region59: #{tpu_custom_call.1} parent=51 // pred_region
          %348 = dma.done %s341, 16
        $region60: #{tpu_custom_call.1} parent=51 // pred_fallthru
          _
        // Predicated region
        $region61: #{tpu_custom_call.1} parent=51 // pred_check
          %p349 = pneg %p139
        $region62: #{tpu_custom_call.1} parent=51 // pred_check_branch
          %351 = sbr.rel (%p349) target = $region64
        $region63: #{tpu_custom_call.1} parent=51 // pred_region
          %353 = dma.done [#allocation6], 256
        $region64: #{tpu_custom_call.1} parent=51 // pred_fallthru
          _
        // Predicated region
        $region65: #{tpu_custom_call.1} parent=51 // pred_check
          %p354 = pneg %p181
        $region66: #{tpu_custom_call.1} parent=51 // pred_check_branch
          %356 = sbr.rel (%p354) target = $region68
        $region67: #{tpu_custom_call.1} parent=51 // pred_region
          %358 = dma.done [#allocation9], 512
        $region68: #{tpu_custom_call.1} parent=51 // pred_fallthru
          _
        %s359 = sand.u32 %s37, 1
        %s360 = scalar_lea.sflag [#allocation3], %s359
        %s361 = sand.u32 %s37, 1
        %s362 = smul.addr %s361, 8
        %s363 = scalar_lea.vmem [#allocation2], %s362
        %p364 = pneg %p50
        %p365 = pneg %p47
        %s366 = sand.u32 %s29, 1
        %s367 = scalar_lea.sflag [#allocation6], %s366
        %s368 = sand.u32 %s63, 1
        %s369 = scalar_lea.vmem [#allocation5], %s368
        %p370 = pneg %p76
        %p371 = pneg %p73
        %p372 = pneg %p97
        %p373 = pneg %p94
        %p374 = pneg %p118
        %p375 = pneg %p115
        %p376 = pneg %p139
        %p377 = pneg %p136
        %p378 = pneg %p160
        %p379 = pneg %p157
        %p380 = pneg %p181
        %p381 = pneg %p178
        %p382 = pneg %p202
        %p383 = pneg %p199
        %p384 = pneg %p228
        %p385 = pneg %p225
        %s386 = sand.u32 %s215, 1
        %s387 = scalar_lea.sflag [#allocation4], %s386
        %s388 = sand.u32 %s215, 1
        %s389 = smul.addr %s388, 8
        %s390 = scalar_lea.vmem [#allocation10], %s389
        %v392 = vld [vmem:[%s334] sm:$0xff]
        %v393 = vld [vmem:[%s2] sm:$0x1]
        %v394 = vld [vmem:[%s3] sm:$0x1]
        %vm395 = vcmask 261120
        %v396 = vsel %vm395, %v392, 0.0
        %397 = vadd.xlane.f32.xlu0 %v396
        %v398 = vpop.xlane.xlu0 %397
        %v399 = vrcp.pop 32.0
        %v400 = vmul.f32 32.0, %v399
        %v401 = vsub.f32 1.0, %v400
        %v402 = vmul.f32 %v399, %v401
        %v403 = vadd.f32 %v399, %v402
        %vm404 = vweird.f32 %v399
        %v405 = vsel %vm404, %v399, %v403
        %v406 = vmul.f32 %v398, %v405
        %v407 = vsub.f32 %v392, %v406
        %v408 = vmul.f32 %v407, %v407
        %v409 = vsel %vm395, %v408, 0.0
        %410 = vadd.xlane.f32.xlu0 %v409
        %v411 = vpop.xlane.xlu0 %410
        %v412 = vmul.f32 %v411, 0.032258064
        %v414 = vperm.slane %v393, 0
        %v416 = vmul.f32 %v414, %v407
        %v417 = vrsqrt.pop %v412
        %v418 = vmul.f32 %v417, %v412
        %v419 = vmul.f32 %v418, %v417
        %v420 = vmul.f32 0.5, %v419
        %v421 = vsub.f32 1.5, %v420
        %v422 = vmul.f32 %v417, %v421
        %v423 = vmul.f32 %v412, %v422
        %vm424 = vcmp.eq.f32.partialorder %v412, inf
        %v425 = vsel %vm424, %v412, %v423
        %vm426 = vcmp.eq.f32.partialorder %v412, 0.0
        %v427 = vand.u32 %v412, 2147483648
        %v428 = vsel %vm426, %v427, %v425
        %v429 = vadd.f32 %v428, 1e-06
        %v430 = vrcp.pop %v429
        %v431 = vmul.f32 %v429, %v430
        %v432 = vsub.f32 1.0, %v431
        %v433 = vmul.f32 %v430, %v432
        %v434 = vadd.f32 %v430, %v433
        %vm435 = vweird.f32 %v429
        %vm436 = vweird.f32 %v430
        %vm437 = vmor %vm435, %vm436
        %v438 = vsel %vm437, %v430, %v434
        %v439 = vand.u32 2147483647, %v429
        %vm440 = vcmp.eq.f32.partialorder %v439, 8.507059e+37
        %v441 = vand.u32 %v429, 2147483648
        %v442 = vor.u32 1.1754944e-38, %v441
        %v443 = vsel %vm440, %v442, %v438
        %v444 = vmul.f32 %v416, %v443
        %v446 = vperm.slane %v394, 0
        %v448 = vadd.f32 %v444, %v446
        %v449 = vpack.c.bf16 %v448, %v448
        %v450 = vld [vmem:[#allocation7] sm:$0xf]
        %v451 = vld [vmem:[#allocation7 + $0x4] sm:$0xf]
        %v452 = vld [vmem:[#allocation7 + $0x8] sm:$0xf]
        %v453 = vld [vmem:[#allocation7 + $0xc] sm:$0xf]
        %v454 = vld [vmem:[%s5] sm:$0x1]
        %v456 = vperm.slane %v454, 0
        %v462 = vunpack.c.l.b16 %v450
        %v463 = vunpack.c.l.b16 %v451
        %v464 = vunpack.c.l.b16 %v452
        %v465 = vunpack.c.l.b16 %v453
        %v466 = vpack.c.b16 %v463, %v462
        %v467 = vpack.c.b16 %v465, %v464
        %v471 = vsel %vm395, %v449, 0
        %473 = vmatpush.bf16.msra.mxu0 0
        %474 = vmatpush.bf16.msra.mxu0 0
        %475 = vmatpush.bf16.msra.mxu0 0
        %476 = vmatpush.bf16.msra.mxu0 0
        %477 = vmatpush.bf16.msra.mxu0 0
        %478 = vmatpush.bf16.msra.mxu0 0
        %479 = vmatpush.bf16.msra.mxu0 %v467
        %480 = vmatpush.bf16.msra.mxu0 %v466
        %481 = vmatmul.bf16.gmra.mxu0 %v471
        %v482 = vpop.f32.mrf.mxu0
        %v483 = vadd.f32 %v456, %v482
        %v484 = vpop.f32.mrf.mxu0
        %485 = vdwg.mxu0
        %v486 = vld [vmem:[%s343] sm:$0x1]
        %v487 = vpack.c.bf16 %v483, %v483
        %v489 = vunpack.c.l.b16 %v487
        %v490 = vpack.c.b16 %v489, %v489
        %491 = vrot.lane.b32.xlu0 %v490, 96
        %v492 = vpop.permute.xlu0 %491
        %vm493 = vcmask 64512
        %v495 = vsel %vm493, %v487, 0
        %v498 = vsel %vm493, %v492, 0
        %500 = vmatpush.bf16.xpose.msra.mxu0 0
        %501 = vmatpush.bf16.xpose.msra.mxu0 0
        %502 = vmatpush.bf16.xpose.msra.mxu0 0
        %503 = vmatpush.bf16.xpose.msra.mxu0 0
        %504 = vmatpush.bf16.xpose.msra.mxu0 0
        %505 = vmatpush.bf16.xpose.msra.mxu0 0
        %506 = vmatpush.bf16.xpose.msra.mxu0 0
        %507 = vmatpush.bf16.xpose.msra.mxu0 %v498
        %508 = vmatmul.bf16.gmra.mxu0 %v495
        %v509 = vpop.f32.mrf.mxu0
        %v510 = vadd.f32 0.0, %v509
        %v511 = vpop.f32.mrf.mxu0
        %512 = vdwg.mxu0
        %v513 = vmul.f32 %v510, 0.35355338
        %v515 = vperm.slane %v486, 0
        %v517 = vadd.f32 %v513, %v515
        %v518 = vsel %vm493, %v517, -inf
        %519 = vmax.xlane.f32.xlu0 %v518
        %v520 = vpop.xlane.xlu0 %519
        %v521 = vsub.f32 %v517, %v520
        %v522 = vmul.f32 %v521, 1.442695
        %v523 = vpow.pop %v522
        %v524 = vsel %vm493, %v523, 0.0
        %525 = vadd.xlane.f32.xlu0 %v524
        %v526 = vpop.xlane.xlu0 %525
        %v527 = vrcp.pop %v526
        %v528 = vmul.f32 %v523, %v527
        %v529 = vpack.c.bf16 %v528, %v528
        %530 = vrot.lane.b32.xlu0 %v490, 64
        %v531 = vpop.permute.xlu0 %530
        %v533 = vsel %vm493, %v529, 0
        %vm535 = vcmask 1043456
        %v537 = vsel %vm535, %v531, 0
        %539 = vmatpush.bf16.msra.mxu0 0
        %540 = vmatpush.bf16.msra.mxu0 0
        %541 = vmatpush.bf16.msra.mxu0 0
        %542 = vmatpush.bf16.msra.mxu0 0
        %543 = vmatpush.bf16.msra.mxu0 0
        %544 = vmatpush.bf16.msra.mxu0 0
        %545 = vmatpush.bf16.msra.mxu0 0
        %546 = vmatpush.bf16.msra.mxu0 %v537
        %547 = vmatmul.bf16.gmra.mxu0 %v533
        %v548 = vpop.f32.mrf.mxu0
        %v549 = vadd.f32 0.0, %v548
        %v550 = vpop.f32.mrf.mxu0
        %551 = vdwg.mxu0
        %v552 = vpack.c.bf16 %v549, %v549
        %v553 = vld [vmem:[#allocation8] sm:$0xff]
        %v554 = vpack.c.bf16 %v553, %v553
        %555 = vrot.lane.b32.xlu0 %v490, 120
        %v556 = vpop.permute.xlu0 %555
        %557 = vrot.lane.b32.xlu0 %v490, 88
        %v558 = vpop.permute.xlu0 %557
        %v560 = vsel %vm493, %v556, 0
        %v563 = vsel %vm493, %v558, 0
        %565 = vmatpush.bf16.xpose.msra.mxu0 0
        %566 = vmatpush.bf16.xpose.msra.mxu0 0
        %567 = vmatpush.bf16.xpose.msra.mxu0 0
        %568 = vmatpush.bf16.xpose.msra.mxu0 0
        %569 = vmatpush.bf16.xpose.msra.mxu0 0
        %570 = vmatpush.bf16.xpose.msra.mxu0 0
        %571 = vmatpush.bf16.xpose.msra.mxu0 0
        %572 = vmatpush.bf16.xpose.msra.mxu0 %v563
        %573 = vmatmul.bf16.gmra.mxu0 %v560
        %v574 = vpop.f32.mrf.mxu0
        %v575 = vadd.f32 0.0, %v574
        %v576 = vpop.f32.mrf.mxu0
        %577 = vdwg.mxu0
        %v578 = vmul.f32 %v575, 0.35355338
        %v579 = vadd.f32 %v578, %v515
        %v580 = vsel %vm493, %v579, -inf
        %581 = vmax.xlane.f32.xlu0 %v580
        %v582 = vpop.xlane.xlu0 %581
        %v583 = vsub.f32 %v579, %v582
        %v584 = vmul.f32 %v583, 1.442695
        %v585 = vpow.pop %v584
        %v586 = vsel %vm493, %v585, 0.0
        %587 = vadd.xlane.f32.xlu0 %v586
        %v588 = vpop.xlane.xlu0 %587
        %v589 = vrcp.pop %v588
        %v590 = vmul.f32 %v585, %v589
        %v591 = vpack.c.bf16 %v590, %v590
        %592 = vrot.lane.b32.xlu0 %v490, 56
        %v593 = vpop.permute.xlu0 %592
        %v595 = vsel %vm493, %v591, 0
        %v598 = vsel %vm535, %v593, 0
        %600 = vmatpush.bf16.msra.mxu0 0
        %601 = vmatpush.bf16.msra.mxu0 0
        %602 = vmatpush.bf16.msra.mxu0 0
        %603 = vmatpush.bf16.msra.mxu0 0
        %604 = vmatpush.bf16.msra.mxu0 0
        %605 = vmatpush.bf16.msra.mxu0 0
        %606 = vmatpush.bf16.msra.mxu0 0
        %607 = vmatpush.bf16.msra.mxu0 %v598
        %608 = vmatmul.bf16.gmra.mxu0 %v595
        %v609 = vpop.f32.mrf.mxu0
        %v610 = vadd.f32 0.0, %v609
        %v611 = vpop.f32.mrf.mxu0
        %612 = vdwg.mxu0
        %v613 = vpack.c.bf16 %v610, %v610
        %v614 = vld [vmem:[#allocation8 + $0x8] sm:$0xff]
        %v615 = vpack.c.bf16 %v614, %v614
        %v617 = vsel %vm493, %v613, 0
        %v620 = vsel %vm535, %v615, 0
        %622 = vmatpush.bf16.msra.mxu0 0
        %623 = vmatpush.bf16.msra.mxu0 0
        %624 = vmatpush.bf16.msra.mxu0 0
        %625 = vmatpush.bf16.msra.mxu0 0
        %626 = vmatpush.bf16.msra.mxu0 0
        %627 = vmatpush.bf16.msra.mxu0 0
        %628 = vmatpush.bf16.msra.mxu0 0
        %629 = vmatpush.bf16.msra.mxu0 %v620
        %630 = vmatmul.bf16.gmra.mxu0 %v617
        %v631 = vpop.f32.mrf.mxu0
        %v632 = vadd.f32 0.0, %v631
        %v633 = vpop.f32.mrf.mxu0
        %634 = vdwg.mxu0
        %v636 = vsel %vm493, %v552, 0
        %v639 = vsel %vm535, %v554, 0
        %641 = vmatpush.bf16.msra.mxu0 0
        %642 = vmatpush.bf16.msra.mxu0 0
        %643 = vmatpush.bf16.msra.mxu0 0
        %644 = vmatpush.bf16.msra.mxu0 0
        %645 = vmatpush.bf16.msra.mxu0 0
        %646 = vmatpush.bf16.msra.mxu0 0
        %647 = vmatpush.bf16.msra.mxu0 0
        %648 = vmatpush.bf16.msra.mxu0 %v639
        %649 = vmatmul.bf16.gmra.mxu0 %v636
        %v650 = vpop.f32.mrf.mxu0
        %v651 = vadd.f32 %v632, %v650
        %v652 = vpop.f32.mrf.mxu0
        %653 = vdwg.mxu0
        %654 = vrot.lane.b32.xlu0 %v490, 112
        %v655 = vpop.permute.xlu0 %654
        %656 = vrot.lane.b32.xlu0 %v490, 80
        %v657 = vpop.permute.xlu0 %656
        %v659 = vsel %vm493, %v655, 0
        %v662 = vsel %vm493, %v657, 0
        %664 = vmatpush.bf16.xpose.msra.mxu0 0
        %665 = vmatpush.bf16.xpose.msra.mxu0 0
        %666 = vmatpush.bf16.xpose.msra.mxu0 0
        %667 = vmatpush.bf16.xpose.msra.mxu0 0
        %668 = vmatpush.bf16.xpose.msra.mxu0 0
        %669 = vmatpush.bf16.xpose.msra.mxu0 0
        %670 = vmatpush.bf16.xpose.msra.mxu0 0
        %671 = vmatpush.bf16.xpose.msra.mxu0 %v662
        %672 = vmatmul.bf16.gmra.mxu0 %v659
        %v673 = vpop.f32.mrf.mxu0
        %v674 = vadd.f32 0.0, %v673
        %v675 = vpop.f32.mrf.mxu0
        %676 = vdwg.mxu0
        %v677 = vmul.f32 %v674, 0.35355338
        %v678 = vadd.f32 %v677, %v515
        %v679 = vsel %vm493, %v678, -inf
        %680 = vmax.xlane.f32.xlu0 %v679
        %v681 = vpop.xlane.xlu0 %680
        %v682 = vsub.f32 %v678, %v681
        %v683 = vmul.f32 %v682, 1.442695
        %v684 = vpow.pop %v683
        %v685 = vsel %vm493, %v684, 0.0
        %686 = vadd.xlane.f32.xlu0 %v685
        %v687 = vpop.xlane.xlu0 %686
        %v688 = vrcp.pop %v687
        %v689 = vmul.f32 %v684, %v688
        %v690 = vpack.c.bf16 %v689, %v689
        %691 = vrot.lane.b32.xlu0 %v490, 48
        %v692 = vpop.permute.xlu0 %691
        %v694 = vsel %vm493, %v690, 0
        %v697 = vsel %vm535, %v692, 0
        %699 = vmatpush.bf16.msra.mxu0 0
        %700 = vmatpush.bf16.msra.mxu0 0
        %701 = vmatpush.bf16.msra.mxu0 0
        %702 = vmatpush.bf16.msra.mxu0 0
        %703 = vmatpush.bf16.msra.mxu0 0
        %704 = vmatpush.bf16.msra.mxu0 0
        %705 = vmatpush.bf16.msra.mxu0 0
        %706 = vmatpush.bf16.msra.mxu0 %v697
        %707 = vmatmul.bf16.gmra.mxu0 %v694
        %v708 = vpop.f32.mrf.mxu0
        %v709 = vadd.f32 0.0, %v708
        %v710 = vpop.f32.mrf.mxu0
        %711 = vdwg.mxu0
        %v712 = vpack.c.bf16 %v709, %v709
        %v713 = vld [vmem:[#allocation8 + $0x10] sm:$0xff]
        %v714 = vpack.c.bf16 %v713, %v713
        %v716 = vsel %vm493, %v712, 0
        %v719 = vsel %vm535, %v714, 0
        %721 = vmatpush.bf16.msra.mxu0 0
        %722 = vmatpush.bf16.msra.mxu0 0
        %723 = vmatpush.bf16.msra.mxu0 0
        %724 = vmatpush.bf16.msra.mxu0 0
        %725 = vmatpush.bf16.msra.mxu0 0
        %726 = vmatpush.bf16.msra.mxu0 0
        %727 = vmatpush.bf16.msra.mxu0 0
        %728 = vmatpush.bf16.msra.mxu0 %v719
        %729 = vmatmul.bf16.gmra.mxu0 %v716
        %v730 = vpop.f32.mrf.mxu0
        %v731 = vadd.f32 0.0, %v730
        %v732 = vpop.f32.mrf.mxu0
        %733 = vdwg.mxu0
        %v734 = vadd.f32 %v651, %v731
        %735 = vrot.lane.b32.xlu0 %v490, 104
        %v736 = vpop.permute.xlu0 %735
        %737 = vrot.lane.b32.xlu0 %v490, 72
        %v738 = vpop.permute.xlu0 %737
        %v740 = vsel %vm493, %v736, 0
        %v743 = vsel %vm493, %v738, 0
        %745 = vmatpush.bf16.xpose.msra.mxu0 0
        %746 = vmatpush.bf16.xpose.msra.mxu0 0
        %747 = vmatpush.bf16.xpose.msra.mxu0 0
        %748 = vmatpush.bf16.xpose.msra.mxu0 0
        %749 = vmatpush.bf16.xpose.msra.mxu0 0
        %750 = vmatpush.bf16.xpose.msra.mxu0 0
        %751 = vmatpush.bf16.xpose.msra.mxu0 0
        %752 = vmatpush.bf16.xpose.msra.mxu0 %v743
        %753 = vmatmul.bf16.gmra.mxu0 %v740
        %v754 = vpop.f32.mrf.mxu0
        %v755 = vadd.f32 0.0, %v754
        %v756 = vpop.f32.mrf.mxu0
        %757 = vdwg.mxu0
        %v758 = vmul.f32 %v755, 0.35355338
        %v759 = vadd.f32 %v758, %v515
        %v760 = vsel %vm493, %v759, -inf
        %761 = vmax.xlane.f32.xlu0 %v760
        %v762 = vpop.xlane.xlu0 %761
        %v763 = vsub.f32 %v759, %v762
        %v764 = vmul.f32 %v763, 1.442695
        %v765 = vpow.pop %v764
        %v766 = vsel %vm493, %v765, 0.0
        %767 = vadd.xlane.f32.xlu0 %v766
        %v768 = vpop.xlane.xlu0 %767
        %v769 = vrcp.pop %v768
        %v770 = vmul.f32 %v765, %v769
        %v771 = vpack.c.bf16 %v770, %v770
        %772 = vrot.lane.b32.xlu0 %v490, 40
        %v773 = vpop.permute.xlu0 %772
        %v775 = vsel %vm493, %v771, 0
        %v778 = vsel %vm535, %v773, 0
        %780 = vmatpush.bf16.msra.mxu0 0
        %781 = vmatpush.bf16.msra.mxu0 0
        %782 = vmatpush.bf16.msra.mxu0 0
        %783 = vmatpush.bf16.msra.mxu0 0
        %784 = vmatpush.bf16.msra.mxu0 0
        %785 = vmatpush.bf16.msra.mxu0 0
        %786 = vmatpush.bf16.msra.mxu0 0
        %787 = vmatpush.bf16.msra.mxu0 %v778
        %788 = vmatmul.bf16.gmra.mxu0 %v775
        %v789 = vpop.f32.mrf.mxu0
        %v790 = vadd.f32 0.0, %v789
        %v791 = vpop.f32.mrf.mxu0
        %792 = vdwg.mxu0
        %v793 = vpack.c.bf16 %v790, %v790
        %v794 = vld [vmem:[#allocation8 + $0x18] sm:$0xff]
        %v795 = vpack.c.bf16 %v794, %v794
        %v797 = vsel %vm493, %v793, 0
        %v800 = vsel %vm535, %v795, 0
        %802 = vmatpush.bf16.msra.mxu0 0
        %803 = vmatpush.bf16.msra.mxu0 0
        %804 = vmatpush.bf16.msra.mxu0 0
        %805 = vmatpush.bf16.msra.mxu0 0
        %806 = vmatpush.bf16.msra.mxu0 0
        %807 = vmatpush.bf16.msra.mxu0 0
        %808 = vmatpush.bf16.msra.mxu0 0
        %809 = vmatpush.bf16.msra.mxu0 %v800
        %810 = vmatmul.bf16.gmra.mxu0 %v797
        %v811 = vpop.f32.mrf.mxu0
        %v812 = vadd.f32 0.0, %v811
        %v813 = vpop.f32.mrf.mxu0
        %814 = vdwg.mxu0
        %v815 = vadd.f32 %v734, %v812
        %v816 = vadd.f32 %v392, %v815
        %v817 = vld [vmem:[%s7] sm:$0x1]
        %v819 = vperm.slane %v817, 0
        %v821 = vadd.f32 %v816, %v819
        %822 = vst.msk [vmem:[%s390] sm:$0xff] %vm395, %v821
        %s823 = sand.u32 %s215, 1
        %s824 = scalar_lea.sflag [#allocation4], %s823
        %s825 = sand.u32 %s215, 1
        %s826 = smul.addr %s825, 8
        %s827 = scalar_lea.vmem [#allocation10], %s826
        // Predicated region
        $region69: #{tpu_custom_call.1} parent=51 // pred_check
          %p828 = pneg %p225
        $region70: #{tpu_custom_call.1} parent=51 // pred_check_branch
          %830 = sbr.rel (%p828) target = $region72
        $region71: #{tpu_custom_call.1} parent=51 // pred_region
          %832 = vsyncadd %s824, 0
          %s833 = smul.addr %s29, 8
          %s834 = scalar_lea.hbm %s8, %s833
          %s836 = sshll.u32 %s827, 4
          %s837 = int_to_ptr.vmem [resolvable:$true] %s836
          %s838 = sshll.u32 %s834, 4
          %s839 = int_to_ptr.hbm [resolvable:$true] %s838
          %841 = dma.vmem_to_hbm [thread:$0]  %s837, 128, %s839, %s824
        $region72: #{tpu_custom_call.1} parent=51 // pred_fallthru
          _
      $region52: #{tpu_custom_call.1} parent=5 // pred_fallthru
        _
      %p842 = scmp.le.s32.totalorder 2, %s24
      // Predicated region
      $region73: #{tpu_custom_call.1} parent=5 // pred_check
        %p843 = pneg %p842
      $region74: #{tpu_custom_call.1} parent=5 // pred_check_branch
        %845 = sbr.rel (%p843) target = $region76
      $region75: #{tpu_custom_call.1} parent=5 // pred_region
        %s846 = ssub.s32 %s24, 2
        // Predicated region
        $region77: #{tpu_custom_call.1} parent=75 // pred_check
          %p847 = pneg %p231
        $region78: #{tpu_custom_call.1} parent=75 // pred_check_branch
          %849 = sbr.rel (%p847) target = $region80
        $region79: #{tpu_custom_call.1} parent=75 // pred_region
          %s850 = sand.u32 %s216, 1
          %s851 = scalar_lea.sflag [#allocation4], %s850
          %s852 = sand.u32 %s216, 1
          %s853 = smul.addr %s852, 8
          %s854 = scalar_lea.vmem [#allocation10], %s853
          %856 = dma.done %s851, 128
        $region80: #{tpu_custom_call.1} parent=75 // pred_fallthru
          _
      $region76: #{tpu_custom_call.1} parent=5 // pred_fallthru
        _
    $region6: #{tpu_custom_call.1} parent=1 // loop_footer
      %s28 = sadd.s32 1, %s24
    $region7: #{tpu_custom_call.1} parent=1 // loop_footer_branch
      %23 = sbr.rel target = $region3
    $region8: #{tpu_custom_call.1} parent=1 // loop_exit
      _
    %857 = vsyncpa [#allocation3], 1
    %s858 = scalar_lea.sflag [#allocation3], 1
    %859 = vsyncpa %s858, 1
    %860 = vsyncpa [#allocation6], 1
    %s861 = scalar_lea.sflag [#allocation6], 1
    %862 = vsyncpa %s861, 1
    %863 = vsyncpa [#allocation9], 1
    %864 = vsyncpa [#allocation4], 1
    %s865 = scalar_lea.sflag [#allocation4], 1
    %866 = vsyncpa %s865, 1

</llo_original>
